<compile_context>
chip_gen: v7x
topology: tpu7x:2x2x1
jax: 0.10.0
libtpu: 0.0.40
codegen_flags: <defaults>
</compile_context>

<pallas_src>
import jax
import jax.numpy as jnp
from jax.experimental import pallas as pl
from jax.experimental.pallas import tpu as pltpu


def _round_up(v, m):
    return (v + m - 1) // m * m


def _fsmn_kernel(x_ref, skip_ref, w1_ref, b1_ref, w2_ref, b2_ref, mw_ref,
                 h_ref, phat_ref, halo_ref):
    """One (b_tile, t_tile) block of the FSMN forward.

    x_ref:    (b_tile, t_tile, I)  input dtype (cast to bf16 here for the MXU)
    skip_ref: (b_tile, t_tile, P)
    w1_ref:   (I, P) bf16          b1_ref: (1, P) f32
    w2_ref:   (P, O) bf16          b2_ref: (1, O) f32
    mw_ref:   (M, P) f32 with mw_ref[k, c] == memory_weights[c, 0, k]
    halo_ref: (b_tile, HALO, P) f32 scratch carrying the previous time tile's last HALO
              rows of p per batch row; zeroed at t == 0.
    """
    M = mw_ref.shape[0]
    bt, tt, P = phat_ref.shape
    halo = halo_ref.shape[1]
    I = x_ref.shape[-1]
    t = pl.program_id(1)

    # Reset the causal-conv history at the start of each batch block's time sweep.
    @pl.when(t == 0)
    def _():
        halo_ref[...] = jnp.zeros_like(halo_ref)

    # ---- first projection: fold (batch, time) rows into the MXU M dim ----
    # bf16 MXU operands, f32 accumulation (v5e-safe: all VPU work below stays f32).
    xb = x_ref[...].astype(jnp.bfloat16).reshape(bt * tt, I)
    p2 = jnp.dot(xb, w1_ref[...], preferred_element_type=jnp.float32) + b1_ref[...]
    p = p2.reshape(bt, tt, P)

    # ---- causal depthwise "memory" conv over time (f32 VPU + sublane shifts) ----
    # slab = [previous tile's tail ; current p]; tap d reads the slab shifted by d rows.
    mw = mw_ref[...]                                       # (M, P), loaded once
    slab = jnp.concatenate([halo_ref[...], p], axis=1)     # (bt, halo + tt, P)
    acc = p * mw[M - 1, :]                                 # delay-0 tap
    for d in range(1, M):                                  # M is small & static
        acc = acc + slab[:, halo - d:halo - d + tt, :] * mw[M - 1 - d, :]
    phat_ref[...] = (acc + skip_ref[...]).astype(phat_ref.dtype)

    # Carry the tail of p as the next time tile's halo (aligned 8-row-multiple slab;
    # only the last M-1 rows are ever consumed).
    halo_ref[...] = p[:, tt - halo:, :]

    # ---- second projection ----
    h2 = jnp.dot(p2.astype(jnp.bfloat16), w2_ref[...],
                 preferred_element_type=jnp.float32) + b2_ref[...]
    h_ref[...] = h2.reshape(bt, tt, h_ref.shape[-1]).astype(h_ref.dtype)


def cvfsmn_v2(x, skip, w1, b1, w2, b2, mem_w, *, t_tile=None, b_tile=None,
              out_dtype=jnp.float32):
    """CVFSMNv2 forward.

    x: (B,T,I), skip: (B,T,P) or None, w1: (I,P), b1: (P,), w2: (P,O), b2: (O,),
    mem_w: (P,1,M) — same parameter shapes as the PyTorch module.
    Returns (h: (B,T,O), p_hat: (B,T,P)) in `out_dtype` (default f32, matching the module;
    pass jnp.bfloat16 to halve output HBM traffic when downstream tolerates it).
    """
    B, T, I = x.shape
    P = w1.shape[1]
    O = w2.shape[1]
    M = mem_w.shape[-1]
    f32, bf16 = jnp.float32, jnp.bfloat16

    if skip is None:
        # Module allows skip_conn=None; a zero skip keeps a single kernel signature.
        skip = jnp.zeros((B, T, P), f32)

    # Causal-conv history rows carried between time tiles, rounded to a sublane multiple.
    halo = max(8, _round_up(M - 1, 8))

    # Time tiling: big tiles amortize the ~0.35us/step overhead; multiple of 16 keeps the
    # bf16 (batch,time)->rows fold sublane-aligned.  T need not divide t_tile: the trailing
    # OOB rows of the last tile are causally downstream of every real row and their output
    # writes are dropped by the partial-block writeback.
    if t_tile is None:
        t_tile = min(_round_up(T, 16), 512)
    t_tile = _round_up(max(t_tile, halo, 16), 16)
    n_t = pl.cdiv(T, t_tile)

    # Batch folding for the small-T (streaming) regime: several batch rows per block give
    # the MXU a taller M dim and fewer grid steps.  Keep >= 2 batch blocks when B >= 2 so
    # the "parallel" axis still feeds both v7x TensorCores.
    if b_tile is None:
        if n_t == 1:
            b_tile = max(1, min(B, 512 // t_tile))
            if B >= 2:
                b_tile = min(b_tile, pl.cdiv(B, 2))
        else:
            b_tile = 1
    b_tile = max(1, min(b_tile, B))
    n_b = pl.cdiv(B, b_tile)
    # TODO(synk): for B == 1 on v7x, splitting T across the two TensorCores (halo recomputed
    # from x) would use the second core; not implemented here.

    # Only the tiny parameter tensors are recast/reshaped; activations go straight in.
    w1_b = w1.astype(bf16)
    w2_b = w2.astype(bf16)
    b1_2 = b1.reshape(1, P).astype(f32)
    b2_2 = b2.reshape(1, O).astype(f32)
    mw_2 = jnp.transpose(mem_w[:, 0, :], (1, 0)).astype(f32)        # (M, P)

    grid_spec = pltpu.PrefetchScalarGridSpec(
        num_scalar_prefetch=0,
        grid=(n_b, n_t),
        in_specs=[
            pl.BlockSpec((b_tile, t_tile, I), lambda b, t: (b, t, 0)),
            pl.BlockSpec((b_tile, t_tile, P), lambda b, t: (b, t, 0)),
            # Resident parameters (constant index_map => fetched once, kept in VMEM).
            pl.BlockSpec((I, P), lambda b, t: (0, 0)),
            pl.BlockSpec((1, P), lambda b, t: (0, 0)),
            pl.BlockSpec((P, O), lambda b, t: (0, 0)),
            pl.BlockSpec((1, O), lambda b, t: (0, 0)),
            pl.BlockSpec((M, P), lambda b, t: (0, 0)),
        ],
        out_specs=[
            pl.BlockSpec((b_tile, t_tile, O), lambda b, t: (b, t, 0)),
            pl.BlockSpec((b_tile, t_tile, P), lambda b, t: (b, t, 0)),
        ],
        scratch_shapes=[pltpu.VMEM((b_tile, halo, P), f32)],
    )

    # Computed VMEM limit (portable to v7x's 64 MiB physical VMEM): double-buffered
    # activation blocks + resident params + scratch + in-kernel temporaries, with margin.
    out_isz = jnp.dtype(out_dtype).itemsize
    blk_rows = b_tile * t_tile
    vmem_est = (2 * blk_rows * (I * x.dtype.itemsize + P * skip.dtype.itemsize
                                + (P + O) * out_isz)
                + 2 * (2 * (I * P + P * O) + 4 * (P + O + M * P))
                + 4 * b_tile * halo * P
                + 8 * 4 * blk_rows * max(I, P, O))
    vmem_limit = int(min(48 * 1024 * 1024, max(16 * 1024 * 1024, vmem_est * 3 // 2)))

    flops = 2 * B * T * (I * P + P * O) + 2 * B * T * P * M
    bytes_accessed = (x.size * x.dtype.itemsize + skip.size * skip.dtype.itemsize
                      + B * T * (O + P) * out_isz
                      + (I * P + P * O) * 2 + (P + O + M * P) * 4)

    h_out, phat_out = pl.pallas_call(
        _fsmn_kernel,
        out_shape=(
            jax.ShapeDtypeStruct((B, T, O), out_dtype),
            jax.ShapeDtypeStruct((B, T, P), out_dtype),
        ),
        grid_spec=grid_spec,
        compiler_params=pltpu.CompilerParams(
            dimension_semantics=("parallel", "arbitrary"),
            vmem_limit_bytes=vmem_limit,
        ),
        cost_estimate=pl.CostEstimate(
            flops=flops, transcendentals=0, bytes_accessed=bytes_accessed),
    )(x, skip, w1_b, b1_2, w2_b, b2_2, mw_2)

    return h_out, phat_out


def _reference(x, skip, w1, b1, w2, b2, mem_w):
    """Pure-JAX transcription of the PyTorch forward (mirrors the kernel's bf16 MXU
    operands / f32 accumulation for a tight comparison)."""
    f32, bf16 = jnp.float32, jnp.bfloat16
    p = jnp.dot(x.astype(bf16), w1.astype(bf16), preferred_element_type=f32) + b1
    B, T, P = p.shape
    M = mem_w.shape[-1]
    p_pad = jnp.pad(p, ((0, 0), (M - 1, 0), (0, 0)))                 # left-pad time
    h_hat = jnp.zeros_like(p)
    for k in range(M):
        h_hat = h_hat + p_pad[:, k:k + T, :] * mem_w[:, 0, k]
    p_hat = h_hat + skip if skip is not None else h_hat
    h = jnp.dot(p.astype(bf16), w2.astype(bf16), preferred_element_type=f32) + b2
    return h, p_hat


def _xavier_uniform(key, shape):
    fan_in, fan_out = shape[0], shape[-1]
    limit = (6.0 / (fan_in + fan_out)) ** 0.5
    return jax.random.uniform(key, shape, jnp.float32, -limit, limit)


if __name__ == "__main__":
    # Small, module-consistent sizes.
    memory_size, input_size, output_size, projection_size = 4, 32, 32, 32
    B, T = 2, 32

    key = jax.random.PRNGKey(0)
    k_x, k_s, k_w1, k_w2, k_mw, k_x3, k_s3 = jax.random.split(key, 7)

    x = jax.random.normal(k_x, (B, T, input_size), jnp.float32)
    skip = jax.random.normal(k_s, (B, T, projection_size), jnp.float32)

    # Deterministic parameter init matching the module's __init__ shapes.
    W1 = _xavier_uniform(k_w1, (input_size, projection_size))
    W2 = _xavier_uniform(k_w2, (projection_size, output_size))
    bias1 = jnp.ones((projection_size,), jnp.float32)
    bias2 = jnp.ones((output_size,), jnp.float32)
    mem_w = _xavier_uniform(k_mw, (projection_size, 1, memory_size))

    h_ref, p_hat_ref = _reference(x, skip, W1, bias1, W2, bias2, mem_w)

    # 1) Default tiling: whole T in one time tile.
    h, p_hat = cvfsmn_v2(x, skip, W1, bias1, W2, bias2, mem_w)
    jax.block_until_ready((h, p_hat))
    assert jnp.allclose(h, h_ref, atol=1e-3, rtol=1e-3)
    assert jnp.allclose(p_hat, p_hat_ref, atol=1e-3, rtol=1e-3)

    # 2) Folded batch block -> exercises the (batch,time)->rows MXU fold.
    h1, p_hat1 = cvfsmn_v2(x, skip, W1, bias1, W2, bias2, mem_w, b_tile=2)
    jax.block_until_ready((h1, p_hat1))
    assert jnp.allclose(h1, h_ref, atol=1e-3, rtol=1e-3)
    assert jnp.allclose(p_hat1, p_hat_ref, atol=1e-3, rtol=1e-3)

    # 3) Two time tiles per batch element -> exercises the carried causal-conv halo.
    h2, p_hat2 = cvfsmn_v2(x, skip, W1, bias1, W2, bias2, mem_w, t_tile=16)
    jax.block_until_ready((h2, p_hat2))
    assert jnp.allclose(h2, h_ref, atol=1e-3, rtol=1e-3)
    assert jnp.allclose(p_hat2, p_hat_ref, atol=1e-3, rtol=1e-3)

    # 4) Ragged T (not a multiple of t_tile) -> exercises the causal OOB-safe remainder tile.
    T3 = 40
    x3 = jax.random.normal(k_x3, (B, T3, input_size), jnp.float32)
    skip3 = jax.random.normal(k_s3, (B, T3, projection_size), jnp.float32)
    h3_ref, p3_ref = _reference(x3, skip3, W1, bias1, W2, bias2, mem_w)
    h3, p3 = cvfsmn_v2(x3, skip3, W1, bias1, W2, bias2, mem_w, t_tile=16)
    jax.block_until_ready((h3, p3))
    assert jnp.allclose(h3, h3_ref, atol=1e-3, rtol=1e-3)
    assert jnp.allclose(p3, p3_ref, atol=1e-3, rtol=1e-3)

    # 5) Optional bf16 output path (halves store-side HBM traffic; f32 accumulation kept).
    hb, pb = cvfsmn_v2(x, skip, W1, bias1, W2, bias2, mem_w, out_dtype=jnp.bfloat16)
    jax.block_until_ready((hb, pb))
    assert jnp.allclose(hb.astype(jnp.float32), h_ref, atol=5e-2, rtol=5e-2)
    assert jnp.allclose(pb.astype(jnp.float32), p_hat_ref, atol=5e-2, rtol=5e-2)

    print("KERNEL_OK")
</pallas_src>

<mosaic_0001>
module attributes {stable_mosaic.version = 11 : i64} {
  func.func @_fsmn_kernel(%arg0: i32, %arg1: i32, %arg2: memref<1x32x32xf32, #tpu.memory_space<vmem>>, %arg3: memref<1x32x32xf32, #tpu.memory_space<vmem>>, %arg4: memref<32x32xbf16, #tpu.memory_space<vmem>>, %arg5: memref<1x32xf32, #tpu.memory_space<vmem>>, %arg6: memref<32x32xbf16, #tpu.memory_space<vmem>>, %arg7: memref<1x32xf32, #tpu.memory_space<vmem>>, %arg8: memref<4x32xf32, #tpu.memory_space<vmem>>, %arg9: memref<1x32x32xf32, #tpu.memory_space<vmem>>, %arg10: memref<1x32x32xf32, #tpu.memory_space<vmem>>, %arg11: memref<1x8x32xf32, #tpu.memory_space<vmem>>) attributes {dimension_semantics = [#tpu.dimension_semantics<parallel>, #tpu.dimension_semantics<arbitrary>], iteration_bounds = array<i64: 2, 1>, scalar_prefetch = 0 : i64, scratch_operands = 1 : i64, tpu.core_type = #tpu.core_type<tc>, window_params = [{transform_indices = @transform_0, window_bounds = array<i64: 1, 32, 32>}, {transform_indices = @transform_1, window_bounds = array<i64: 1, 32, 32>}, {pipeline_mode = #tpu.pipeline_mode<synchronous>, transform_indices = @transform_2, window_bounds = array<i64: 32, 32>}, {pipeline_mode = #tpu.pipeline_mode<synchronous>, transform_indices = @transform_3, window_bounds = array<i64: 1, 32>}, {pipeline_mode = #tpu.pipeline_mode<synchronous>, transform_indices = @transform_4, window_bounds = array<i64: 32, 32>}, {pipeline_mode = #tpu.pipeline_mode<synchronous>, transform_indices = @transform_5, window_bounds = array<i64: 1, 32>}, {pipeline_mode = #tpu.pipeline_mode<synchronous>, transform_indices = @transform_6, window_bounds = array<i64: 4, 32>}, {transform_indices = @transform_7, window_bounds = array<i64: 1, 32, 32>}, {transform_indices = @transform_8, window_bounds = array<i64: 1, 32, 32>}]} {
    %c0_i32 = arith.constant 0 : i32
    %0 = arith.cmpi eq, %arg1, %c0_i32 : i32
    %1 = arith.extui %0 : i1 to i32
    %c0_i32_0 = arith.constant 0 : i32
    %2 = arith.cmpi ne, %1, %c0_i32_0 : i32
    scf.if %2 {
      %cst_29 = arith.constant 0.000000e+00 : f32
      %54 = vector.broadcast %cst_29 : f32 to vector<1x8x32xf32>
      %c0_30 = arith.constant 0 : index
      %c0_31 = arith.constant 0 : index
      %c0_32 = arith.constant 0 : index
      %55 = vector.load %arg11[%c0_30, %c0_31, %c0_32] : memref<1x8x32xf32, #tpu.memory_space<vmem>>, vector<1x8x32xf32>
      tpu.vector_store %arg11[%c0_30, %c0_31, %c0_32], %54 {strides = array<i32>} : memref<1x8x32xf32, #tpu.memory_space<vmem>>, vector<1x8x32xf32>,
    } else {
    }
    %c0 = arith.constant 0 : index
    %c0_1 = arith.constant 0 : index
    %c0_2 = arith.constant 0 : index
    %3 = vector.load %arg2[%c0, %c0_1, %c0_2] : memref<1x32x32xf32, #tpu.memory_space<vmem>>, vector<1x32x32xf32>
    %4 = arith.truncf %3 : vector<1x32x32xf32> to vector<1x32x32xbf16>
    %5 = vector.shape_cast %4 : vector<1x32x32xbf16> to vector<32x32xbf16>
    %c0_3 = arith.constant 0 : index
    %c0_4 = arith.constant 0 : index
    %6 = vector.load %arg4[%c0_3, %c0_4] : memref<32x32xbf16, #tpu.memory_space<vmem>>, vector<32x32xbf16>
    %cst = arith.constant dense<0.000000e+00> : vector<32x32xf32>
    %7 = tpu.matmul %5, %6, %cst {dimension_numbers = #tpu.dot_dimension_numbers<[1], [0], [0], [1], [0, 0, 1, 1], [], []>} : vector<32x32xbf16>, vector<32x32xbf16>, vector<32x32xf32> -> vector<32x32xf32>
    %c0_5 = arith.constant 0 : index
    %c0_6 = arith.constant 0 : index
    %8 = vector.load %arg5[%c0_5, %c0_6] : memref<1x32xf32, #tpu.memory_space<vmem>>, vector<1x32xf32>
    %9 = vector.broadcast %8 : vector<1x32xf32> to vector<32x32xf32>
    %10 = arith.addf %7, %9 : vector<32x32xf32>
    %11 = vector.shape_cast %10 : vector<32x32xf32> to vector<1x32x32xf32>
    %c0_7 = arith.constant 0 : index
    %c0_8 = arith.constant 0 : index
    %12 = vector.load %arg8[%c0_7, %c0_8] : memref<4x32xf32, #tpu.memory_space<vmem>>, vector<4x32xf32>
    %c0_9 = arith.constant 0 : index
    %c0_10 = arith.constant 0 : index
    %c0_11 = arith.constant 0 : index
    %13 = vector.load %arg11[%c0_9, %c0_10, %c0_11] : memref<1x8x32xf32, #tpu.memory_space<vmem>>, vector<1x8x32xf32>
    %14 = tpu.concatenate %13, %11 in 1 : vector<1x8x32xf32>, vector<1x32x32xf32> -> vector<1x40x32xf32>
    %15 = vector.extract_strided_slice %12 {offsets = [3, 0], sizes = [1, 32], strides = [1, 1]} : vector<4x32xf32> to vector<1x32xf32>
    %16 = vector.shape_cast %15 : vector<1x32xf32> to vector<32xf32>
    %17 = vector.shape_cast %16 : vector<32xf32> to vector<1x1x32xf32>
    %18 = vector.broadcast %17 : vector<1x1x32xf32> to vector<1x32x32xf32>
    %19 = arith.mulf %11, %18 : vector<1x32x32xf32>
    %20 = vector.extract_strided_slice %14 {offsets = [0, 7, 0], sizes = [1, 32, 32], strides = [1, 1, 1]} : vector<1x40x32xf32> to vector<1x32x32xf32>
    %21 = vector.extract_strided_slice %12 {offsets = [2, 0], sizes = [1, 32], strides = [1, 1]} : vector<4x32xf32> to vector<1x32xf32>
    %22 = vector.shape_cast %21 : vector<1x32xf32> to vector<32xf32>
    %23 = vector.shape_cast %22 : vector<32xf32> to vector<1x1x32xf32>
    %24 = vector.broadcast %23 : vector<1x1x32xf32> to vector<1x32x32xf32>
    %25 = arith.mulf %20, %24 : vector<1x32x32xf32>
    %26 = arith.addf %19, %25 : vector<1x32x32xf32>
    %27 = vector.extract_strided_slice %14 {offsets = [0, 6, 0], sizes = [1, 32, 32], strides = [1, 1, 1]} : vector<1x40x32xf32> to vector<1x32x32xf32>
    %28 = vector.extract_strided_slice %12 {offsets = [1, 0], sizes = [1, 32], strides = [1, 1]} : vector<4x32xf32> to vector<1x32xf32>
    %29 = vector.shape_cast %28 : vector<1x32xf32> to vector<32xf32>
    %30 = vector.shape_cast %29 : vector<32xf32> to vector<1x1x32xf32>
    %31 = vector.broadcast %30 : vector<1x1x32xf32> to vector<1x32x32xf32>
    %32 = arith.mulf %27, %31 : vector<1x32x32xf32>
    %33 = arith.addf %26, %32 : vector<1x32x32xf32>
    %34 = vector.extract_strided_slice %14 {offsets = [0, 5, 0], sizes = [1, 32, 32], strides = [1, 1, 1]} : vector<1x40x32xf32> to vector<1x32x32xf32>
    %35 = vector.extract_strided_slice %12 {offsets = [0, 0], sizes = [1, 32], strides = [1, 1]} : vector<4x32xf32> to vector<1x32xf32>
    %36 = vector.shape_cast %35 : vector<1x32xf32> to vector<32xf32>
    %37 = vector.shape_cast %36 : vector<32xf32> to vector<1x1x32xf32>
    %38 = vector.broadcast %37 : vector<1x1x32xf32> to vector<1x32x32xf32>
    %39 = arith.mulf %34, %38 : vector<1x32x32xf32>
    %40 = arith.addf %33, %39 : vector<1x32x32xf32>
    %c0_12 = arith.constant 0 : index
    %c0_13 = arith.constant 0 : index
    %c0_14 = arith.constant 0 : index
    %41 = vector.load %arg3[%c0_12, %c0_13, %c0_14] : memref<1x32x32xf32, #tpu.memory_space<vmem>>, vector<1x32x32xf32>
    %42 = arith.addf %40, %41 : vector<1x32x32xf32>
    %c0_15 = arith.constant 0 : index
    %c0_16 = arith.constant 0 : index
    %c0_17 = arith.constant 0 : index
    %43 = vector.load %arg10[%c0_15, %c0_16, %c0_17] : memref<1x32x32xf32, #tpu.memory_space<vmem>>, vector<1x32x32xf32>
    tpu.vector_store %arg10[%c0_15, %c0_16, %c0_17], %42 {strides = array<i32>} : memref<1x32x32xf32, #tpu.memory_space<vmem>>, vector<1x32x32xf32>,
    %44 = vector.extract_strided_slice %11 {offsets = [0, 24, 0], sizes = [1, 8, 32], strides = [1, 1, 1]} : vector<1x32x32xf32> to vector<1x8x32xf32>
    %c0_18 = arith.constant 0 : index
    %c0_19 = arith.constant 0 : index
    %c0_20 = arith.constant 0 : index
    %45 = vector.load %arg11[%c0_18, %c0_19, %c0_20] : memref<1x8x32xf32, #tpu.memory_space<vmem>>, vector<1x8x32xf32>
    tpu.vector_store %arg11[%c0_18, %c0_19, %c0_20], %44 {strides = array<i32>} : memref<1x8x32xf32, #tpu.memory_space<vmem>>, vector<1x8x32xf32>,
    %46 = arith.truncf %10 : vector<32x32xf32> to vector<32x32xbf16>
    %c0_21 = arith.constant 0 : index
    %c0_22 = arith.constant 0 : index
    %47 = vector.load %arg6[%c0_21, %c0_22] : memref<32x32xbf16, #tpu.memory_space<vmem>>, vector<32x32xbf16>
    %cst_23 = arith.constant dense<0.000000e+00> : vector<32x32xf32>
    %48 = tpu.matmul %46, %47, %cst_23 {dimension_numbers = #tpu.dot_dimension_numbers<[1], [0], [0], [1], [0, 0, 1, 1], [], []>} : vector<32x32xbf16>, vector<32x32xbf16>, vector<32x32xf32> -> vector<32x32xf32>
    %c0_24 = arith.constant 0 : index
    %c0_25 = arith.constant 0 : index
    %49 = vector.load %arg7[%c0_24, %c0_25] : memref<1x32xf32, #tpu.memory_space<vmem>>, vector<1x32xf32>
    %50 = vector.broadcast %49 : vector<1x32xf32> to vector<32x32xf32>
    %51 = arith.addf %48, %50 : vector<32x32xf32>
    %52 = vector.shape_cast %51 : vector<32x32xf32> to vector<1x32x32xf32>
    %c0_26 = arith.constant 0 : index
    %c0_27 = arith.constant 0 : index
    %c0_28 = arith.constant 0 : index
    %53 = vector.load %arg9[%c0_26, %c0_27, %c0_28] : memref<1x32x32xf32, #tpu.memory_space<vmem>>, vector<1x32x32xf32>
    tpu.vector_store %arg9[%c0_26, %c0_27, %c0_28], %52 {strides = array<i32>} : memref<1x32x32xf32, #tpu.memory_space<vmem>>, vector<1x32x32xf32>,
    return
  }
  func.func @transform_0(%arg0: i32, %arg1: i32) -> (i32, i32, i32) {
    %c0_i32 = arith.constant 0 : i32
    %c0_i32_0 = arith.constant 0 : i32
    return %arg0, %arg1, %c0_i32 : i32, i32, i32
  }
  func.func @transform_1(%arg0: i32, %arg1: i32) -> (i32, i32, i32) {
    %c0_i32 = arith.constant 0 : i32
    %c0_i32_0 = arith.constant 0 : i32
    return %arg0, %arg1, %c0_i32 : i32, i32, i32
  }
  func.func @transform_2(%arg0: i32, %arg1: i32) -> (i32, i32) {
    %c0_i32 = arith.constant 0 : i32
    %c0_i32_0 = arith.constant 0 : i32
    %c0_i32_1 = arith.constant 0 : i32
    return %c0_i32, %c0_i32_0 : i32, i32
  }
  func.func @transform_3(%arg0: i32, %arg1: i32) -> (i32, i32) {
    %c0_i32 = arith.constant 0 : i32
    %c0_i32_0 = arith.constant 0 : i32
    %c0_i32_1 = arith.constant 0 : i32
    return %c0_i32, %c0_i32_0 : i32, i32
  }
  func.func @transform_4(%arg0: i32, %arg1: i32) -> (i32, i32) {
    %c0_i32 = arith.constant 0 : i32
    %c0_i32_0 = arith.constant 0 : i32
    %c0_i32_1 = arith.constant 0 : i32
    return %c0_i32, %c0_i32_0 : i32, i32
  }
  func.func @transform_5(%arg0: i32, %arg1: i32) -> (i32, i32) {
    %c0_i32 = arith.constant 0 : i32
    %c0_i32_0 = arith.constant 0 : i32
    %c0_i32_1 = arith.constant 0 : i32
    return %c0_i32, %c0_i32_0 : i32, i32
  }
  func.func @transform_6(%arg0: i32, %arg1: i32) -> (i32, i32) {
    %c0_i32 = arith.constant 0 : i32
    %c0_i32_0 = arith.constant 0 : i32
    %c0_i32_1 = arith.constant 0 : i32
    return %c0_i32, %c0_i32_0 : i32, i32
  }
  func.func @transform_7(%arg0: i32, %arg1: i32) -> (i32, i32, i32) {
    %c0_i32 = arith.constant 0 : i32
    %c0_i32_0 = arith.constant 0 : i32
    return %arg0, %arg1, %c0_i32 : i32, i32, i32
  }
  func.func @transform_8(%arg0: i32, %arg1: i32) -> (i32, i32, i32) {
    %c0_i32 = arith.constant 0 : i32
    %c0_i32_0 = arith.constant 0 : i32
    return %arg0, %arg1, %c0_i32 : i32, i32, i32
  }
}

</mosaic_0001>

<llo_original>
// kernel: tpu_custom_call.1
$region0: #{tpu_custom_call.1}
  #allocation0 [shape = 'u32[]', space=smem, size = 0x4, offset = 0x4, fixed_abs, tag = 'smem constant byte address 0x4 - core index']
  #allocation1 [shape = 'u32[144,128]{1,0:T(1,128)}', space=vmem, size = 0x12000, scoped, tag = 'internal scratch']
  #allocation2 [shape = 'f32[1,8,32]{2,1,0:T(8,128)}', space=vmem, size = 0x1000, scoped, tag = 'scratch operand']
  %s0 = inlined_call_operand.hbm [shape: f32[2,32,32], index: 0, kind: input, shape index: {}]
  %s1 = inlined_call_operand.hbm [shape: f32[2,32,32], index: 1, kind: input, shape index: {}]
  %s2 = inlined_call_operand.hbm [shape: bf16[32,32], index: 2, kind: input, shape index: {}]
  %s3 = inlined_call_operand.vmem [shape: f32[1,32], index: 3, kind: input, shape index: {}]
  %s4 = inlined_call_operand.hbm [shape: bf16[32,32], index: 4, kind: input, shape index: {}]
  %s5 = inlined_call_operand.vmem [shape: f32[1,32], index: 5, kind: input, shape index: {}]
  %s6 = inlined_call_operand.vmem [shape: f32[4,32], index: 6, kind: input, shape index: {}]
  %s7 = inlined_call_operand.hbm [shape: f32[2,32,32], index: 7, kind: output, shape index: {0}]
  %s8 = inlined_call_operand.hbm [shape: f32[2,32,32], index: 8, kind: output, shape index: {1}]
  %9 = xla_tuple %s7, %s8
  %s10 = sld [smem:[#allocation0]]
  $region89: #{tpu_custom_call.1} parent=0
    _
  %s12 = ssub.s32 1, %s10
  %s13 = scalar_select 0, %s12, %s10
  $region1: #{tpu_custom_call.1} parent=0
    #allocation3 [shape = 'u8[32768]{0}', space=vmem, size = 0x8000, scoped, tag = 'input window, operand 0']
    #allocation4 [shape = 's32[2]{0}', space=sflag, size = 0x8, scoped, tag = 'scoped memory for tpu_custom_call.1']
    #allocation5 [shape = 's32[2]{0}', space=sflag, size = 0x8, scoped, tag = 'scoped memory for tpu_custom_call.1']
    #allocation6 [shape = 'u8[32768]{0}', space=vmem, size = 0x8000, scoped, tag = 'input window, operand 1']
    #allocation7 [shape = 's32[2]{0}', space=sflag, size = 0x8, scoped, tag = 'scoped memory for tpu_custom_call.1']
    #allocation8 [shape = 'u8[8192]{0}', space=vmem, size = 0x2000, scoped, tag = 'input window, operand 2, single buffered']
    #allocation9 [shape = 'u8[8192]{0}', space=vmem, size = 0x2000, scoped, tag = 'input window, operand 4, single buffered']
    #allocation10 [shape = 's32[1]{0}', space=sflag, size = 0x4, scoped, tag = 'scoped memory for tpu_custom_call.1']
    #allocation11 [shape = 'u8[32768]{0}', space=vmem, size = 0x8000, scoped, tag = 'output window, operand 0']
    #allocation12 [shape = 'u8[32768]{0}', space=vmem, size = 0x8000, scoped, tag = 'output window, operand 1']
    #allocation13 [shape = 's32[2]{0}', space=sflag, size = 0x8, scoped, tag = 'scoped memory for tpu_custom_call.1']
    %14 = vsyncpa [#allocation4], 0
    %s15 = scalar_lea.sflag [#allocation4], 1
    %16 = vsyncpa %s15, 0
    %17 = vsyncpa [#allocation7], 0
    %s18 = scalar_lea.sflag [#allocation7], 1
    %19 = vsyncpa %s18, 0
    %20 = vsyncpa [#allocation10], 0
    %21 = vsyncpa [#allocation5], 0
    %s22 = scalar_lea.sflag [#allocation5], 1
    %23 = vsyncpa %s22, 0
    %24 = vsyncpa [#allocation13], 0
    %s25 = scalar_lea.sflag [#allocation13], 1
    %26 = vsyncpa %s25, 0
    loop: start=0, step=1, limit=4
    $region2: #{tpu_custom_call.1} parent=1 // loop_pre_header
      _
    $region3: #{tpu_custom_call.1} parent=1 // loop_header
      %s28 = sphi 0, %s32
      %p29 = scmp.ge.s32.totalorder %s28, 4
      %s35 = sphi 0, %s47
      %s36 = sphi 0, %s43
      %s37 = sphi 0, %s35
      %s38 = sphi 0, %s36
      %s39 = sphi 0, %s37
      %s40 = sphi 0, %s38
      %s52 = sphi 0, %s54
      %s55 = sphi 0, %s52
      %s56 = sphi 0, %s55
      %s72 = sphi 0, %s56
      %s80 = sphi 0, %s82
      %s83 = sphi 0, %s80
      %s84 = sphi 0, %s83
      %s100 = sphi 0, %s84
      %s104 = sphi 0, %s104
      %s106 = sphi 0, %s104
      %s107 = sphi 0, %s106
      %s121 = sphi 0, %s107
      %s125 = sphi 0, %s125
      %s127 = sphi 0, %s125
      %s128 = sphi 0, %s127
      %s142 = sphi 0, %s128
      %s146 = sphi 0, %s146
      %s148 = sphi 0, %s146
      %s149 = sphi 0, %s148
      %s163 = sphi 0, %s149
      %s167 = sphi 0, %s167
      %s169 = sphi 0, %s167
      %s170 = sphi 0, %s169
      %s184 = sphi 0, %s170
      %s188 = sphi 0, %s188
      %s190 = sphi 0, %s188
      %s191 = sphi 0, %s190
      %s205 = sphi 0, %s191
      %s213 = sphi 0, %s215
      %s216 = sphi 0, %s213
      %s217 = sphi 0, %s216
      %s233 = sphi 0, %s217
      %s241 = sphi 0, %s243
      %s244 = sphi 0, %s241
      %s245 = sphi 0, %s244
      %s261 = sphi 0, %s245
    $region4: #{tpu_custom_call.1} parent=1 // loop_header_branch
      %31 = sbr.rel (%p29) target = $region8
    $region5: #{tpu_custom_call.1} parent=1 // loop_body
      %s33 = ssub.s32 %s28, 1
      %s34 = ssub.s32 %s28, 2
      %s41 = sadd.s32 1, %s36
      %p42 = scmp.ge.s32.totalorder %s41, 1
      %s43 = scalar_select %p42, 0, %s41
      %s44 = sadd.s32 1, %s35
      %s45 = scalar_select %p42, %s44, %s35
      %p46 = scmp.ge.s32.totalorder %s45, 2
      %s47 = scalar_select %p46, 0, %s45
      %s48 = ssub.s32 %s35, %s47
      %s49 = ssub.s32 %s36, %s43
      %s50 = sor.u32 %s48, %s49
      %p51 = scmp.eq.s32.totalorder %s50, 0
      %s53 = sadd.s32 %s52, 1
      %s54 = scalar_select %p51, %s52, %s53
      %p57 = pneg %p51
      %p58 = scmp.eq.s32.totalorder %s28, 1
      %p59 = por %p57, %p58
      %p60 = scmp.ne.s32.totalorder %s52, %s55
      %p61 = scmp.eq.s32.totalorder %s28, 0
      %p62 = por %p60, %p61
      %p63 = scmp.ne.s32.totalorder %s52, %s55
      %p64 = scmp.eq.s32.totalorder %s33, 1
      %p65 = por %p63, %p64
      %p66 = scmp.ne.s32.totalorder %s55, %s56
      %p67 = scmp.eq.s32.totalorder %s33, 0
      %p68 = por %p66, %p67
      %p69 = scmp.ne.s32.totalorder %s55, %s56
      %p70 = scmp.eq.s32.totalorder %s34, 1
      %p71 = por %p69, %p70
      %p73 = scmp.ne.s32.totalorder %s56, %s72
      %p74 = scmp.eq.s32.totalorder %s34, 0
      %p75 = por %p73, %p74
      %s76 = ssub.s32 %s35, %s47
      %s77 = ssub.s32 %s36, %s43
      %s78 = sor.u32 %s76, %s77
      %p79 = scmp.eq.s32.totalorder %s78, 0
      %s81 = sadd.s32 %s80, 1
      %s82 = scalar_select %p79, %s80, %s81
      %p85 = pneg %p79
      %p86 = scmp.eq.s32.totalorder %s28, 1
      %p87 = por %p85, %p86
      %p88 = scmp.ne.s32.totalorder %s80, %s83
      %p89 = scmp.eq.s32.totalorder %s28, 0
      %p90 = por %p88, %p89
      %p91 = scmp.ne.s32.totalorder %s80, %s83
      %p92 = scmp.eq.s32.totalorder %s33, 1
      %p93 = por %p91, %p92
      %p94 = scmp.ne.s32.totalorder %s83, %s84
      %p95 = scmp.eq.s32.totalorder %s33, 0
      %p96 = por %p94, %p95
      %p97 = scmp.ne.s32.totalorder %s83, %s84
      %p98 = scmp.eq.s32.totalorder %s34, 1
      %p99 = por %p97, %p98
      %p101 = scmp.ne.s32.totalorder %s84, %s100
      %p102 = scmp.eq.s32.totalorder %s34, 0
      %p103 = por %p101, %p102
      %s105 = sadd.s32 %s104, 1
      %p108 = scmp.eq.s32.totalorder %s28, 1
      %p109 = scmp.ne.s32.totalorder %s104, %s106
      %p110 = scmp.eq.s32.totalorder %s28, 0
      %p111 = por %p109, %p110
      %p112 = scmp.ne.s32.totalorder %s104, %s106
      %p113 = scmp.eq.s32.totalorder %s33, 1
      %p114 = por %p112, %p113
      %p115 = scmp.ne.s32.totalorder %s106, %s107
      %p116 = scmp.eq.s32.totalorder %s33, 0
      %p117 = por %p115, %p116
      %p118 = scmp.ne.s32.totalorder %s106, %s107
      %p119 = scmp.eq.s32.totalorder %s34, 1
      %p120 = por %p118, %p119
      %p122 = scmp.ne.s32.totalorder %s107, %s121
      %p123 = scmp.eq.s32.totalorder %s34, 0
      %p124 = por %p122, %p123
      %s126 = sadd.s32 %s125, 1
      %p129 = scmp.eq.s32.totalorder %s28, 1
      %p130 = scmp.ne.s32.totalorder %s125, %s127
      %p131 = scmp.eq.s32.totalorder %s28, 0
      %p132 = por %p130, %p131
      %p133 = scmp.ne.s32.totalorder %s125, %s127
      %p134 = scmp.eq.s32.totalorder %s33, 1
      %p135 = por %p133, %p134
      %p136 = scmp.ne.s32.totalorder %s127, %s128
      %p137 = scmp.eq.s32.totalorder %s33, 0
      %p138 = por %p136, %p137
      %p139 = scmp.ne.s32.totalorder %s127, %s128
      %p140 = scmp.eq.s32.totalorder %s34, 1
      %p141 = por %p139, %p140
      %p143 = scmp.ne.s32.totalorder %s128, %s142
      %p144 = scmp.eq.s32.totalorder %s34, 0
      %p145 = por %p143, %p144
      %s147 = sadd.s32 %s146, 1
      %p150 = scmp.eq.s32.totalorder %s28, 1
      %p151 = scmp.ne.s32.totalorder %s146, %s148
      %p152 = scmp.eq.s32.totalorder %s28, 0
      %p153 = por %p151, %p152
      %p154 = scmp.ne.s32.totalorder %s146, %s148
      %p155 = scmp.eq.s32.totalorder %s33, 1
      %p156 = por %p154, %p155
      %p157 = scmp.ne.s32.totalorder %s148, %s149
      %p158 = scmp.eq.s32.totalorder %s33, 0
      %p159 = por %p157, %p158
      %p160 = scmp.ne.s32.totalorder %s148, %s149
      %p161 = scmp.eq.s32.totalorder %s34, 1
      %p162 = por %p160, %p161
      %p164 = scmp.ne.s32.totalorder %s149, %s163
      %p165 = scmp.eq.s32.totalorder %s34, 0
      %p166 = por %p164, %p165
      %s168 = sadd.s32 %s167, 1
      %p171 = scmp.eq.s32.totalorder %s28, 1
      %p172 = scmp.ne.s32.totalorder %s167, %s169
      %p173 = scmp.eq.s32.totalorder %s28, 0
      %p174 = por %p172, %p173
      %p175 = scmp.ne.s32.totalorder %s167, %s169
      %p176 = scmp.eq.s32.totalorder %s33, 1
      %p177 = por %p175, %p176
      %p178 = scmp.ne.s32.totalorder %s169, %s170
      %p179 = scmp.eq.s32.totalorder %s33, 0
      %p180 = por %p178, %p179
      %p181 = scmp.ne.s32.totalorder %s169, %s170
      %p182 = scmp.eq.s32.totalorder %s34, 1
      %p183 = por %p181, %p182
      %p185 = scmp.ne.s32.totalorder %s170, %s184
      %p186 = scmp.eq.s32.totalorder %s34, 0
      %p187 = por %p185, %p186
      %s189 = sadd.s32 %s188, 1
      %p192 = scmp.eq.s32.totalorder %s28, 1
      %p193 = scmp.ne.s32.totalorder %s188, %s190
      %p194 = scmp.eq.s32.totalorder %s28, 0
      %p195 = por %p193, %p194
      %p196 = scmp.ne.s32.totalorder %s188, %s190
      %p197 = scmp.eq.s32.totalorder %s33, 1
      %p198 = por %p196, %p197
      %p199 = scmp.ne.s32.totalorder %s190, %s191
      %p200 = scmp.eq.s32.totalorder %s33, 0
      %p201 = por %p199, %p200
      %p202 = scmp.ne.s32.totalorder %s190, %s191
      %p203 = scmp.eq.s32.totalorder %s34, 1
      %p204 = por %p202, %p203
      %p206 = scmp.ne.s32.totalorder %s191, %s205
      %p207 = scmp.eq.s32.totalorder %s34, 0
      %p208 = por %p206, %p207
      %s209 = ssub.s32 %s35, %s47
      %s210 = ssub.s32 %s36, %s43
      %s211 = sor.u32 %s209, %s210
      %p212 = scmp.eq.s32.totalorder %s211, 0
      %s214 = sadd.s32 %s213, 1
      %s215 = scalar_select %p212, %s213, %s214
      %p218 = pneg %p212
      %p219 = scmp.eq.s32.totalorder %s28, 1
      %p220 = por %p218, %p219
      %p221 = scmp.ne.s32.totalorder %s213, %s216
      %p222 = scmp.eq.s32.totalorder %s28, 0
      %p223 = por %p221, %p222
      %p224 = scmp.ne.s32.totalorder %s213, %s216
      %p225 = scmp.eq.s32.totalorder %s33, 1
      %p226 = por %p224, %p225
      %p227 = scmp.ne.s32.totalorder %s216, %s217
      %p228 = scmp.eq.s32.totalorder %s33, 0
      %p229 = por %p227, %p228
      %p230 = scmp.ne.s32.totalorder %s216, %s217
      %p231 = scmp.eq.s32.totalorder %s34, 1
      %p232 = por %p230, %p231
      %p234 = scmp.ne.s32.totalorder %s217, %s233
      %p235 = scmp.eq.s32.totalorder %s34, 0
      %p236 = por %p234, %p235
      %s237 = ssub.s32 %s35, %s47
      %s238 = ssub.s32 %s36, %s43
      %s239 = sor.u32 %s237, %s238
      %p240 = scmp.eq.s32.totalorder %s239, 0
      %s242 = sadd.s32 %s241, 1
      %s243 = scalar_select %p240, %s241, %s242
      %p246 = pneg %p240
      %p247 = scmp.eq.s32.totalorder %s28, 1
      %p248 = por %p246, %p247
      %p249 = scmp.ne.s32.totalorder %s241, %s244
      %p250 = scmp.eq.s32.totalorder %s28, 0
      %p251 = por %p249, %p250
      %p252 = scmp.ne.s32.totalorder %s241, %s244
      %p253 = scmp.eq.s32.totalorder %s33, 1
      %p254 = por %p252, %p253
      %p255 = scmp.ne.s32.totalorder %s244, %s245
      %p256 = scmp.eq.s32.totalorder %s33, 0
      %p257 = por %p255, %p256
      %p258 = scmp.ne.s32.totalorder %s244, %s245
      %p259 = scmp.eq.s32.totalorder %s34, 1
      %p260 = por %p258, %p259
      %p262 = scmp.ne.s32.totalorder %s245, %s261
      %p263 = scmp.eq.s32.totalorder %s34, 0
      %p264 = por %p262, %p263
      %p265 = scmp.le.s32.totalorder 1, %s28
      %p266 = scmp.lt.s32.totalorder %s28, 3
      %p267 = pnand %p265, %p266
      %p268 = pneg %p267
      // Predicated region
      $region9: #{tpu_custom_call.1} parent=5 // pred_check
        _
      $region10: #{tpu_custom_call.1} parent=5 // pred_check_branch
        %270 = sbr.rel (%p267) target = $region12
      $region11: #{tpu_custom_call.1} parent=5 // pred_region
        %s271 = ssub.s32 %s28, 1
        // Predicated region
        $region13: #{tpu_custom_call.1} parent=11 // pred_check
          %p272 = pneg %p117
        $region14: #{tpu_custom_call.1} parent=11 // pred_check_branch
          %274 = sbr.rel (%p272) target = $region16
        $region15: #{tpu_custom_call.1} parent=11 // pred_region
          %s276 = ssub.s32 256, 256
          %277 = vsyncadd [#allocation7], %s276
          %s278 = sshll.u32 [#allocation8], 4
          %s279 = int_to_ptr.vmem [resolvable:$true] %s278
          %284 = dma.hbm_to_vmem [thread:$0]  %s2, 256, %s279, [#allocation7], 64, 64, 4
        $region16: #{tpu_custom_call.1} parent=11 // pred_fallthru
          _
        // Predicated region
        $region17: #{tpu_custom_call.1} parent=11 // pred_check
          %p285 = pneg %p138
        $region18: #{tpu_custom_call.1} parent=11 // pred_check_branch
          %287 = sbr.rel (%p285) target = $region20
        $region19: #{tpu_custom_call.1} parent=11 // pred_region
          _
        $region20: #{tpu_custom_call.1} parent=11 // pred_fallthru
          _
        // Predicated region
        $region21: #{tpu_custom_call.1} parent=11 // pred_check
          %p288 = pneg %p159
        $region22: #{tpu_custom_call.1} parent=11 // pred_check_branch
          %290 = sbr.rel (%p288) target = $region24
        $region23: #{tpu_custom_call.1} parent=11 // pred_region
          %s292 = ssub.s32 256, 256
          %293 = vsyncadd [#allocation10], %s292
          %s294 = sshll.u32 [#allocation9], 4
          %s295 = int_to_ptr.vmem [resolvable:$true] %s294
          %300 = dma.hbm_to_vmem [thread:$0]  %s4, 256, %s295, [#allocation10], 64, 64, 4
        $region24: #{tpu_custom_call.1} parent=11 // pred_fallthru
          _
        // Predicated region
        $region25: #{tpu_custom_call.1} parent=11 // pred_check
          %p301 = pneg %p180
        $region26: #{tpu_custom_call.1} parent=11 // pred_check_branch
          %303 = sbr.rel (%p301) target = $region28
        $region27: #{tpu_custom_call.1} parent=11 // pred_region
          _
        $region28: #{tpu_custom_call.1} parent=11 // pred_fallthru
          _
        // Predicated region
        $region29: #{tpu_custom_call.1} parent=11 // pred_check
          %p304 = pneg %p201
        $region30: #{tpu_custom_call.1} parent=11 // pred_check_branch
          %306 = sbr.rel (%p304) target = $region32
        $region31: #{tpu_custom_call.1} parent=11 // pred_region
          _
        $region32: #{tpu_custom_call.1} parent=11 // pred_fallthru
          _
      $region12: #{tpu_custom_call.1} parent=5 // pred_fallthru
        _
      %p307 = scmp.lt.s32.totalorder %s28, 2
      // Predicated region
      $region33: #{tpu_custom_call.1} parent=5 // pred_check
        %p308 = pneg %p307
      $region34: #{tpu_custom_call.1} parent=5 // pred_check_branch
        %310 = sbr.rel (%p308) target = $region36
      $region35: #{tpu_custom_call.1} parent=5 // pred_region
        // Predicated region
        $region37: #{tpu_custom_call.1} parent=35 // pred_check
          %p311 = pneg %p62
        $region38: #{tpu_custom_call.1} parent=35 // pred_check_branch
          %313 = sbr.rel (%p311) target = $region40
        $region39: #{tpu_custom_call.1} parent=35 // pred_region
          %s314 = sand.u32 %s52, 1
          %s315 = scalar_lea.sflag [#allocation4], %s314
          %s316 = sand.u32 %s52, 1
          %s317 = smul.addr %s316, 32
          %s318 = scalar_lea.vmem [#allocation3], %s317
          %s319 = smul.u32 4, %s36
          %s321 = ssub.s32 512, 512
          %322 = vsyncadd %s315, %s321
          %s323 = smul.addr %s35, 4
          %s324 = sadd.s32 %s319, %s323
          %s325 = smul.addr %s324, 128
          %s326 = scalar_lea.hbm %s0, %s325
          %s327 = sshll.u32 %s318, 4
          %s328 = int_to_ptr.vmem [resolvable:$true] %s327
          %333 = dma.hbm_to_vmem [thread:$0]  %s326, 512, %s328, %s315, 128, 128, 8
        $region40: #{tpu_custom_call.1} parent=35 // pred_fallthru
          _
        // Predicated region
        $region41: #{tpu_custom_call.1} parent=35 // pred_check
          %p334 = pneg %p90
        $region42: #{tpu_custom_call.1} parent=35 // pred_check_branch
          %336 = sbr.rel (%p334) target = $region44
        $region43: #{tpu_custom_call.1} parent=35 // pred_region
          %s337 = sand.u32 %s28, 1
          %s338 = scalar_lea.sflag [#allocation7], %s337
          %s339 = sand.u32 %s80, 1
          %s340 = smul.addr %s339, 32
          %s341 = scalar_lea.vmem [#allocation6], %s340
          %s342 = smul.u32 4, %s36
          %s344 = ssub.s32 512, 512
          %345 = vsyncadd %s338, %s344
          %s346 = smul.addr %s35, 4
          %s347 = sadd.s32 %s342, %s346
          %s348 = smul.addr %s347, 128
          %s349 = scalar_lea.hbm %s1, %s348
          %s350 = sshll.u32 %s341, 4
          %s351 = int_to_ptr.vmem [resolvable:$true] %s350
          %356 = dma.hbm_to_vmem [thread:$0]  %s349, 512, %s351, %s338, 128, 128, 8
        $region44: #{tpu_custom_call.1} parent=35 // pred_fallthru
          _
      $region36: #{tpu_custom_call.1} parent=5 // pred_fallthru
        _
      %p357 = scmp.le.s32.totalorder 1, %s28
      %p358 = scmp.lt.s32.totalorder %s28, 3
      %p359 = pnand %p357, %p358
      %p360 = pneg %p359
      // Predicated region
      $region45: #{tpu_custom_call.1} parent=5 // pred_check
        _
      $region46: #{tpu_custom_call.1} parent=5 // pred_check_branch
        %362 = sbr.rel (%p359) target = $region48
      $region47: #{tpu_custom_call.1} parent=5 // pred_region
        %s363 = ssub.s32 %s28, 1
        %s364 = sand.u32 %s55, 1
        %s365 = scalar_lea.sflag [#allocation4], %s364
        %s366 = sand.u32 %s55, 1
        %s367 = smul.addr %s366, 32
        %s368 = scalar_lea.vmem [#allocation3], %s367
        // Predicated region
        $region49: #{tpu_custom_call.1} parent=47 // pred_check
          %p369 = pneg %p68
        $region50: #{tpu_custom_call.1} parent=47 // pred_check_branch
          %371 = sbr.rel (%p369) target = $region52
        $region51: #{tpu_custom_call.1} parent=47 // pred_region
          %372 = dma.done %s365, 512
        $region52: #{tpu_custom_call.1} parent=47 // pred_fallthru
          _
        %s373 = sand.u32 %s33, 1
        %s374 = scalar_lea.sflag [#allocation7], %s373
        %s375 = sand.u32 %s83, 1
        %s376 = smul.addr %s375, 32
        %s377 = scalar_lea.vmem [#allocation6], %s376
        // Predicated region
        $region53: #{tpu_custom_call.1} parent=47 // pred_check
          %p378 = pneg %p96
        $region54: #{tpu_custom_call.1} parent=47 // pred_check_branch
          %380 = sbr.rel (%p378) target = $region56
        $region55: #{tpu_custom_call.1} parent=47 // pred_region
          %381 = dma.done %s374, 512
        $region56: #{tpu_custom_call.1} parent=47 // pred_fallthru
          _
        // Predicated region
        $region57: #{tpu_custom_call.1} parent=47 // pred_check
          %p382 = pneg %p117
        $region58: #{tpu_custom_call.1} parent=47 // pred_check_branch
          %384 = sbr.rel (%p382) target = $region60
        $region59: #{tpu_custom_call.1} parent=47 // pred_region
          %385 = dma.done [#allocation7], 256
        $region60: #{tpu_custom_call.1} parent=47 // pred_fallthru
          _
        // Predicated region
        $region61: #{tpu_custom_call.1} parent=47 // pred_check
          %p386 = pneg %p159
        $region62: #{tpu_custom_call.1} parent=47 // pred_check_branch
          %388 = sbr.rel (%p386) target = $region64
        $region63: #{tpu_custom_call.1} parent=47 // pred_region
          %389 = dma.done [#allocation10], 256
        $region64: #{tpu_custom_call.1} parent=47 // pred_fallthru
          _
        %s390 = sand.u32 %s55, 1
        %s391 = scalar_lea.sflag [#allocation4], %s390
        %s392 = sand.u32 %s55, 1
        %s393 = smul.addr %s392, 32
        %s394 = scalar_lea.vmem [#allocation3], %s393
        %p395 = pneg %p68
        %p396 = pneg %p65
        %s397 = sand.u32 %s33, 1
        %s398 = scalar_lea.sflag [#allocation7], %s397
        %s399 = sand.u32 %s83, 1
        %s400 = smul.addr %s399, 32
        %s401 = scalar_lea.vmem [#allocation6], %s400
        %p402 = pneg %p96
        %p403 = pneg %p93
        %p404 = pneg %p117
        %p405 = pneg %p114
        %p406 = pneg %p138
        %p407 = pneg %p135
        %p408 = pneg %p159
        %p409 = pneg %p156
        %p410 = pneg %p180
        %p411 = pneg %p177
        %p412 = pneg %p201
        %p413 = pneg %p198
        %p414 = pneg %p229
        %p415 = pneg %p226
        %s416 = sand.u32 %s216, 1
        %s417 = scalar_lea.sflag [#allocation5], %s416
        %s418 = sand.u32 %s216, 1
        %s419 = smul.addr %s418, 32
        %s420 = scalar_lea.vmem [#allocation11], %s419
        %p421 = pneg %p257
        %p422 = pneg %p254
        %s423 = sand.u32 %s244, 1
        %s424 = scalar_lea.sflag [#allocation13], %s423
        %s425 = sand.u32 %s244, 1
        %s426 = smul.addr %s425, 32
        %s427 = scalar_lea.vmem [#allocation12], %s426
        %s428 = smul.u32 4, %s38
        %s429 = smul.u32 4, %s38
        %s430 = smul.u32 4, %s38
        %s431 = smul.u32 4, %s38
        %p433 = scmp.eq.s32.totalorder %s38, 0
        // Predicated region
        $region65: #{tpu_custom_call.1} parent=47 // pred_check
          %p434 = pneg %p433
        $region66: #{tpu_custom_call.1} parent=47 // pred_check_branch
          %436 = sbr.rel (%p434) target = $region68
        $region67: #{tpu_custom_call.1} parent=47 // pred_region
          %vm437 = vcmask 261120
          %438 = vst.msk [vmem:[#allocation2] sm:$0xff] %vm437, 0.0
        $region68: #{tpu_custom_call.1} parent=47 // pred_fallthru
          _
        %v439 = vld [vmem:[%s368] sm:$0xff]
        %v440 = vld [vmem:[%s368 + $0x8] sm:$0xff]
        %v441 = vld [vmem:[%s368 + $0x10] sm:$0xff]
        %v442 = vld [vmem:[%s368 + $0x18] sm:$0xff]
        %v443 = vpack.c.bf16 %v440, %v439
        %v444 = vpack.c.bf16 %v442, %v441
        %v445 = vld [vmem:[#allocation8] sm:$0xf]
        %v446 = vld [vmem:[#allocation8 + $0x4] sm:$0xf]
        %v447 = vld [vmem:[#allocation8 + $0x8] sm:$0xf]
        %v448 = vld [vmem:[#allocation8 + $0xc] sm:$0xf]
        %v449 = vld [vmem:[%s3] sm:$0x1]
        %v451 = vlaneseq
        %v452 = vshrl.u32 %v451, 7
        %v453 = vsub.s32 0, %v452
        %v454 = vrot.slane %v449, %v453
        %v460 = vunpack.c.l.b16 %v445
        %v461 = vunpack.c.l.b16 %v446
        %v462 = vunpack.c.l.b16 %v447
        %v463 = vunpack.c.l.b16 %v448
        %v464 = vpack.c.b16 %v461, %v460
        %v465 = vpack.c.b16 %v463, %v462
        %vm468 = vcmask 261120
        %v470 = vsel %vm468, %v443, 0
        %v473 = vsel %vm468, %v444, 0
        %475 = vmatprep.subr.bf16.mxu0 0
        %476 = vmatpush1.bf16.msra.mxu0 %v464
        %477 = vmatprep.subr.bf16.mxu0 0
        %478 = vmatpush1.bf16.msra.mxu0 %v465
        %479 = vmatprep.subr.bf16.mxu0 0
        %480 = vmatpush1.bf16.msra.mxu0 0
        %481 = vmatprep.subr.bf16.mxu0 0
        %482 = vmatpush1.bf16.msra.mxu0 0
        %483 = vmatprep.subr.bf16.mxu0 0
        %484 = vmatpush1.bf16.msra.mxu0 0
        %485 = vmatprep.subr.bf16.mxu0 0
        %486 = vmatpush1.bf16.msra.mxu0 0
        %487 = vmatprep.subr.bf16.mxu0 0
        %488 = vmatpush1.bf16.msra.mxu0 0
        %489 = vmatprep.subr.bf16.mxu0 0
        %490 = vmatpush1.bf16.msra.mxu0 0
        %491 = vmatprep.subr.bf16.mxu0 0
        %492 = vmatpush1.bf16.msra.mxu0 0
        %493 = vmatprep.subr.bf16.mxu0 0
        %494 = vmatpush1.bf16.msra.mxu0 0
        %495 = vmatprep.subr.bf16.mxu0 0
        %496 = vmatpush1.bf16.msra.mxu0 0
        %497 = vmatprep.subr.bf16.mxu0 0
        %498 = vmatpush1.bf16.msra.mxu0 0
        %499 = vmatprep.subr.bf16.mxu0 0
        %500 = vmatpush1.bf16.msra.mxu0 0
        %501 = vmatprep.subr.bf16.mxu0 0
        %502 = vmatpush1.bf16.msra.mxu0 0
        %503 = vmatprep.subr.bf16.mxu0 0
        %504 = vmatpush1.bf16.msra.mxu0 0
        %505 = vmatprep.subr.bf16.mxu0 0
        %506 = vmatpush1.bf16.msra.mxu0 0
        %507 = vmatprep.mubr.bf16.mxu0 0
        %508 = vmatmul.mubr.bf16.gmra.mrb[0].mxu0 %v470
        %v509 = vpop.f32.mrb[0].mxu0
        %v510 = vadd.f32 %v454, %v509
        %v511 = vpop.f32.mrb[0].mxu0
        %v512 = vpop.f32.mrb[0].mxu0
        %v513 = vadd.f32 %v454, %v512
        %v514 = vpop.f32.mrb[0].mxu0
        %515 = vmatprep.mubr.bf16.mxu0 0
        %516 = vmatmul.mubr.bf16.gmra.mrb[0].mxu0 %v473
        %v517 = vpop.f32.mrb[0].mxu0
        %v518 = vadd.f32 %v454, %v517
        %v519 = vpop.f32.mrb[0].mxu0
        %v520 = vpop.f32.mrb[0].mxu0
        %v521 = vadd.f32 %v454, %v520
        %v522 = vpop.f32.mrb[0].mxu0
        %523 = vdwg.mxu0
        %v524 = vld [vmem:[%s6] sm:$0xf]
        %v525 = vld [vmem:[#allocation2] sm:$0xff]
        %v526 = vlaneseq
        %v527 = vshrl.u32 %v526, 7
        %v528 = vsub.s32 3, %v527
        %v529 = vrot.slane %v524, %v528
        %v530 = vmul.f32 %v510, %v529
        %v531 = vmul.f32 %v513, %v529
        %v532 = vmul.f32 %v518, %v529
        %v533 = vmul.f32 %v521, %v529
        %v534 = vlaneseq
        %v535 = vshrl.u32 %v534, 7
        %v536 = vsub.s32 2, %v535
        %v537 = vrot.slane %v524, %v536
        %v538 = vmul.f32 %v525, %v537
        %v539 = vmul.f32 %v510, %v537
        %v540 = vmul.f32 %v513, %v537
        %v541 = vmul.f32 %v518, %v537
        %v542 = vmul.f32 %v521, %v537
        %vm548 = vcmask 1040384
        %v549 = vrot.slane %v538, 7
        %v550 = vrot.slane %v539, 7
        %v551 = vsel %vm548, %v549, %v550
        %v552 = vrot.slane %v540, 7
        %v553 = vsel %vm548, %v550, %v552
        %v554 = vrot.slane %v541, 7
        %v555 = vsel %vm548, %v552, %v554
        %v556 = vrot.slane %v542, 7
        %v557 = vsel %vm548, %v554, %v556
        %v562 = vadd.f32 %v530, %v551
        %v563 = vadd.f32 %v531, %v553
        %v564 = vadd.f32 %v532, %v555
        %v565 = vadd.f32 %v533, %v557
        %v566 = vlaneseq
        %v567 = vshrl.u32 %v566, 7
        %v568 = vsub.s32 1, %v567
        %v569 = vrot.slane %v524, %v568
        %v570 = vmul.f32 %v525, %v569
        %v571 = vmul.f32 %v510, %v569
        %v572 = vmul.f32 %v513, %v569
        %v573 = vmul.f32 %v518, %v569
        %v574 = vmul.f32 %v521, %v569
        %vm580 = vcmask 1041408
        %v581 = vrot.slane %v570, 6
        %v582 = vrot.slane %v571, 6
        %v583 = vsel %vm580, %v581, %v582
        %v584 = vrot.slane %v572, 6
        %v585 = vsel %vm580, %v582, %v584
        %v586 = vrot.slane %v573, 6
        %v587 = vsel %vm580, %v584, %v586
        %v588 = vrot.slane %v574, 6
        %v589 = vsel %vm580, %v586, %v588
        %v594 = vadd.f32 %v562, %v583
        %v595 = vadd.f32 %v563, %v585
        %v596 = vadd.f32 %v564, %v587
        %v597 = vadd.f32 %v565, %v589
        %v598 = vlaneseq
        %v599 = vshrl.u32 %v598, 7
        %v600 = vsub.s32 0, %v599
        %v601 = vrot.slane %v524, %v600
        %v602 = vmul.f32 %v525, %v601
        %v603 = vmul.f32 %v510, %v601
        %v604 = vmul.f32 %v513, %v601
        %v605 = vmul.f32 %v518, %v601
        %v606 = vmul.f32 %v521, %v601
        %vm612 = vcmask 1042432
        %v613 = vrot.slane %v602, 5
        %v614 = vrot.slane %v603, 5
        %v615 = vsel %vm612, %v613, %v614
        %v616 = vrot.slane %v604, 5
        %v617 = vsel %vm612, %v614, %v616
        %v618 = vrot.slane %v605, 5
        %v619 = vsel %vm612, %v616, %v618
        %v620 = vrot.slane %v606, 5
        %v621 = vsel %vm612, %v618, %v620
        %v626 = vadd.f32 %v594, %v615
        %v627 = vadd.f32 %v595, %v617
        %v628 = vadd.f32 %v596, %v619
        %v629 = vadd.f32 %v597, %v621
        %v630 = vld [vmem:[%s377] sm:$0xff]
        %v631 = vld [vmem:[%s377 + $0x8] sm:$0xff]
        %v632 = vld [vmem:[%s377 + $0x10] sm:$0xff]
        %v633 = vld [vmem:[%s377 + $0x18] sm:$0xff]
        %v634 = vadd.f32 %v626, %v630
        %v635 = vadd.f32 %v627, %v631
        %v636 = vadd.f32 %v628, %v632
        %v637 = vadd.f32 %v629, %v633
        %638 = vst.msk [vmem:[%s427] sm:$0xff] %vm468, %v634
        %639 = vst.msk [vmem:[%s427 + $0x8] sm:$0xff] %vm468, %v635
        %640 = vst.msk [vmem:[%s427 + $0x10] sm:$0xff] %vm468, %v636
        %641 = vst.msk [vmem:[%s427 + $0x18] sm:$0xff] %vm468, %v637
        %642 = vst.msk [vmem:[#allocation2] sm:$0xff] %vm468, %v521
        %v643 = vpack.c.bf16 %v513, %v510
        %v644 = vpack.c.bf16 %v521, %v518
        %v645 = vld [vmem:[#allocation9] sm:$0xf]
        %v646 = vld [vmem:[#allocation9 + $0x4] sm:$0xf]
        %v647 = vld [vmem:[#allocation9 + $0x8] sm:$0xf]
        %v648 = vld [vmem:[#allocation9 + $0xc] sm:$0xf]
        %v649 = vld [vmem:[%s5] sm:$0x1]
        %v651 = vlaneseq
        %v652 = vshrl.u32 %v651, 7
        %v653 = vsub.s32 0, %v652
        %v654 = vrot.slane %v649, %v653
        %v660 = vunpack.c.l.b16 %v645
        %v661 = vunpack.c.l.b16 %v646
        %v662 = vunpack.c.l.b16 %v647
        %v663 = vunpack.c.l.b16 %v648
        %v664 = vpack.c.b16 %v661, %v660
        %v665 = vpack.c.b16 %v663, %v662
        %v669 = vsel %vm468, %v643, 0
        %v672 = vsel %vm468, %v644, 0
        %674 = vmatprep.subr.bf16.mxu0 0
        %675 = vmatpush1.bf16.msra.mxu0 %v664
        %676 = vmatprep.subr.bf16.mxu0 0
        %677 = vmatpush1.bf16.msra.mxu0 %v665
        %678 = vmatprep.subr.bf16.mxu0 0
        %679 = vmatpush1.bf16.msra.mxu0 0
        %680 = vmatprep.subr.bf16.mxu0 0
        %681 = vmatpush1.bf16.msra.mxu0 0
        %682 = vmatprep.subr.bf16.mxu0 0
        %683 = vmatpush1.bf16.msra.mxu0 0
        %684 = vmatprep.subr.bf16.mxu0 0
        %685 = vmatpush1.bf16.msra.mxu0 0
        %686 = vmatprep.subr.bf16.mxu0 0
        %687 = vmatpush1.bf16.msra.mxu0 0
        %688 = vmatprep.subr.bf16.mxu0 0
        %689 = vmatpush1.bf16.msra.mxu0 0
        %690 = vmatprep.subr.bf16.mxu0 0
        %691 = vmatpush1.bf16.msra.mxu0 0
        %692 = vmatprep.subr.bf16.mxu0 0
        %693 = vmatpush1.bf16.msra.mxu0 0
        %694 = vmatprep.subr.bf16.mxu0 0
        %695 = vmatpush1.bf16.msra.mxu0 0
        %696 = vmatprep.subr.bf16.mxu0 0
        %697 = vmatpush1.bf16.msra.mxu0 0
        %698 = vmatprep.subr.bf16.mxu0 0
        %699 = vmatpush1.bf16.msra.mxu0 0
        %700 = vmatprep.subr.bf16.mxu0 0
        %701 = vmatpush1.bf16.msra.mxu0 0
        %702 = vmatprep.subr.bf16.mxu0 0
        %703 = vmatpush1.bf16.msra.mxu0 0
        %704 = vmatprep.subr.bf16.mxu0 0
        %705 = vmatpush1.bf16.msra.mxu0 0
        %706 = vmatprep.mubr.bf16.mxu0 0
        %707 = vmatmul.mubr.bf16.gmra.mrb[0].mxu0 %v669
        %v708 = vpop.f32.mrb[0].mxu0
        %v709 = vadd.f32 %v654, %v708
        %v710 = vpop.f32.mrb[0].mxu0
        %v711 = vpop.f32.mrb[0].mxu0
        %v712 = vadd.f32 %v654, %v711
        %v713 = vpop.f32.mrb[0].mxu0
        %714 = vmatprep.mubr.bf16.mxu0 0
        %715 = vmatmul.mubr.bf16.gmra.mrb[0].mxu0 %v672
        %v716 = vpop.f32.mrb[0].mxu0
        %v717 = vadd.f32 %v654, %v716
        %v718 = vpop.f32.mrb[0].mxu0
        %v719 = vpop.f32.mrb[0].mxu0
        %v720 = vadd.f32 %v654, %v719
        %v721 = vpop.f32.mrb[0].mxu0
        %722 = vdwg.mxu0
        %723 = vst.msk [vmem:[%s420] sm:$0xff] %vm468, %v709
        %724 = vst.msk [vmem:[%s420 + $0x8] sm:$0xff] %vm468, %v712
        %725 = vst.msk [vmem:[%s420 + $0x10] sm:$0xff] %vm468, %v717
        %726 = vst.msk [vmem:[%s420 + $0x18] sm:$0xff] %vm468, %v720
        %s727 = sand.u32 %s216, 1
        %s728 = scalar_lea.sflag [#allocation5], %s727
        %s729 = sand.u32 %s216, 1
        %s730 = smul.addr %s729, 32
        %s731 = scalar_lea.vmem [#allocation11], %s730
        %s732 = sand.u32 %s244, 1
        %s733 = scalar_lea.sflag [#allocation13], %s732
        %s734 = sand.u32 %s244, 1
        %s735 = smul.addr %s734, 32
        %s736 = scalar_lea.vmem [#allocation12], %s735
        // Predicated region
        $region69: #{tpu_custom_call.1} parent=47 // pred_check
          %p737 = pneg %p226
        $region70: #{tpu_custom_call.1} parent=47 // pred_check_branch
          %739 = sbr.rel (%p737) target = $region72
        $region71: #{tpu_custom_call.1} parent=47 // pred_region
          %s740 = smul.u32 4, %s38
          %s742 = ssub.s32 512, 512
          %743 = vsyncadd %s728, %s742
          %s744 = smul.addr %s37, 4
          %s745 = sadd.s32 %s740, %s744
          %s746 = smul.addr %s745, 128
          %s747 = scalar_lea.hbm %s7, %s746
          %s748 = sshll.u32 %s731, 4
          %s749 = int_to_ptr.vmem [resolvable:$true] %s748
          %754 = dma.vmem_to_hbm [thread:$0]  %s749, 512, %s747, %s728, 128, 128, 8
        $region72: #{tpu_custom_call.1} parent=47 // pred_fallthru
          _
        // Predicated region
        $region73: #{tpu_custom_call.1} parent=47 // pred_check
          %p755 = pneg %p254
        $region74: #{tpu_custom_call.1} parent=47 // pred_check_branch
          %757 = sbr.rel (%p755) target = $region76
        $region75: #{tpu_custom_call.1} parent=47 // pred_region
          %s758 = smul.u32 4, %s38
          %s760 = ssub.s32 512, 512
          %761 = vsyncadd %s733, %s760
          %s762 = smul.addr %s37, 4
          %s763 = sadd.s32 %s758, %s762
          %s764 = smul.addr %s763, 128
          %s765 = scalar_lea.hbm %s8, %s764
          %s766 = sshll.u32 %s736, 4
          %s767 = int_to_ptr.vmem [resolvable:$true] %s766
          %772 = dma.vmem_to_hbm [thread:$0]  %s767, 512, %s765, %s733, 128, 128, 8
        $region76: #{tpu_custom_call.1} parent=47 // pred_fallthru
          _
      $region48: #{tpu_custom_call.1} parent=5 // pred_fallthru
        _
      %p773 = scmp.le.s32.totalorder 2, %s28
      // Predicated region
      $region77: #{tpu_custom_call.1} parent=5 // pred_check
        %p774 = pneg %p773
      $region78: #{tpu_custom_call.1} parent=5 // pred_check_branch
        %776 = sbr.rel (%p774) target = $region80
      $region79: #{tpu_custom_call.1} parent=5 // pred_region
        %s777 = ssub.s32 %s28, 2
        // Predicated region
        $region81: #{tpu_custom_call.1} parent=79 // pred_check
          %p778 = pneg %p232
        $region82: #{tpu_custom_call.1} parent=79 // pred_check_branch
          %780 = sbr.rel (%p778) target = $region84
        $region83: #{tpu_custom_call.1} parent=79 // pred_region
          %s781 = sand.u32 %s217, 1
          %s782 = scalar_lea.sflag [#allocation5], %s781
          %s783 = sand.u32 %s217, 1
          %s784 = smul.addr %s783, 32
          %s785 = scalar_lea.vmem [#allocation11], %s784
          %786 = dma.done %s782, 512
        $region84: #{tpu_custom_call.1} parent=79 // pred_fallthru
          _
        // Predicated region
        $region85: #{tpu_custom_call.1} parent=79 // pred_check
          %p787 = pneg %p260
        $region86: #{tpu_custom_call.1} parent=79 // pred_check_branch
          %789 = sbr.rel (%p787) target = $region88
        $region87: #{tpu_custom_call.1} parent=79 // pred_region
          %s790 = sand.u32 %s245, 1
          %s791 = scalar_lea.sflag [#allocation13], %s790
          %s792 = sand.u32 %s245, 1
          %s793 = smul.addr %s792, 32
          %s794 = scalar_lea.vmem [#allocation12], %s793
          %795 = dma.done %s791, 512
        $region88: #{tpu_custom_call.1} parent=79 // pred_fallthru
          _
      $region80: #{tpu_custom_call.1} parent=5 // pred_fallthru
        _
    $region6: #{tpu_custom_call.1} parent=1 // loop_footer
      %s32 = sadd.s32 1, %s28
    $region7: #{tpu_custom_call.1} parent=1 // loop_footer_branch
      %27 = sbr.rel target = $region3
    $region8: #{tpu_custom_call.1} parent=1 // loop_exit
      _
    %796 = vsyncpa [#allocation4], 1
    %s797 = scalar_lea.sflag [#allocation4], 1
    %798 = vsyncpa %s797, 1
    %799 = vsyncpa [#allocation7], 1
    %s800 = scalar_lea.sflag [#allocation7], 1
    %801 = vsyncpa %s800, 1
    %802 = vsyncpa [#allocation10], 1
    %803 = vsyncpa [#allocation5], 1
    %s804 = scalar_lea.sflag [#allocation5], 1
    %805 = vsyncpa %s804, 1
    %806 = vsyncpa [#allocation13], 1
    %s807 = scalar_lea.sflag [#allocation13], 1
    %808 = vsyncpa %s807, 1

</llo_original>
